<compile_context>
chip_gen: v5e
topology: v5e:2x2
jax: 0.10.0
libtpu: 0.0.40
codegen_flags: <defaults>
</compile_context>

<pallas_src>
import functools

import jax
import jax.numpy as jnp
from jax.experimental import pallas as pl
from jax.experimental.pallas import tpu as pltpu


def _label_smoothing_kernel(x_ref, t_ref, out_ref, *, confidence, smoothing,
                            n_rows):
    i = pl.program_id(0)

    x = x_ref[...].astype(jnp.float32)                    # (TM, C)
    tm, c = x.shape

    # Numerically stable log-softmax along the class (lane) axis.
    m = jnp.max(x, axis=-1, keepdims=True)                # (TM, 1)
    xs = x - m
    lse = jnp.log(jnp.sum(jnp.exp(xs), axis=-1, keepdims=True))
    logprobs = xs - lse                                    # (TM, C)

    # Fused weighted reduction:
    #   confidence * nll + smoothing * mean_c(-logprobs)
    # = -sum_c [ (confidence * onehot + smoothing/C) * logprobs ]
    col = jax.lax.broadcasted_iota(jnp.int32, (tm, c), 1)  # (TM, C)
    tgt = t_ref[...]                                       # (TM, 1) int32
    base_w = smoothing / c                                 # python float
    w = jnp.where(col == tgt, base_w + confidence, base_w)
    loss = -jnp.sum(w * logprobs, axis=-1, keepdims=True)  # (TM, 1)

    # Mask out tail-padding rows so the wrapper's mean is unbiased.
    row = jax.lax.broadcasted_iota(jnp.int32, (tm, 1), 0) + i * tm
    loss = jnp.where(row < n_rows, loss, 0.0)

    out_ref[...] = loss


def _choose_tile_m(n, c, itemsize):
    # Keep the double-buffered logits tile around <= 8 MiB so the kernel fits
    # comfortably in the default scoped-VMEM budget on v5e/v6e/v7x.
    budget = 8 * 1024 * 1024
    tm = budget // max(1, 2 * c * itemsize)
    tm = min(tm, 1024, max(n, 8))
    tm = max(8, (tm // 8) * 8)
    return int(tm)


def label_smoothing_loss(x, target, smoothing=0.0, tile_m=None):
    """x: (N, C) logits, target: (N,) int labels. Returns scalar mean loss."""
    n, c = x.shape
    confidence = 1.0 - smoothing

    if tile_m is None:
        tile_m = _choose_tile_m(n, c, jnp.dtype(x.dtype).itemsize)

    num_tiles = pl.cdiv(n, tile_m)
    n_pad = num_tiles * tile_m

    target2d = target.astype(jnp.int32).reshape(n, 1)
    if n_pad != n:
        x = jnp.pad(x, ((0, n_pad - n), (0, 0)))
        target2d = jnp.pad(target2d, ((0, n_pad - n), (0, 0)))

    kernel = functools.partial(
        _label_smoothing_kernel,
        confidence=float(confidence),
        smoothing=float(smoothing),
        n_rows=n,
    )

    per_row = pl.pallas_call(
        kernel,
        out_shape=jax.ShapeDtypeStruct((n_pad, 1), jnp.float32),
        grid_spec=pltpu.PrefetchScalarGridSpec(
            num_scalar_prefetch=0,
            grid=(num_tiles,),
            in_specs=[
                pl.BlockSpec((tile_m, c), lambda i: (i, 0)),
                pl.BlockSpec((tile_m, 1), lambda i: (i, 0)),
            ],
            out_specs=pl.BlockSpec((tile_m, 1), lambda i: (i, 0)),
        ),
        compiler_params=pltpu.CompilerParams(
            dimension_semantics=("parallel",),
            vmem_limit_bytes=32 * 1024 * 1024,
        ),
    )(x, target2d)

    # Final reduction / mean in the wrapper (keeps the grid axis parallel).
    return jnp.sum(per_row) / jnp.float32(n)


def _reference(x, target, smoothing):
    confidence = 1.0 - smoothing
    logprobs = jax.nn.log_softmax(x.astype(jnp.float32), axis=-1)
    nll = -jnp.take_along_axis(logprobs, target[:, None], axis=-1)[:, 0]
    smooth = -jnp.mean(logprobs, axis=-1)
    return jnp.mean(confidence * nll + smoothing * smooth)


if __name__ == "__main__":
    key = jax.random.PRNGKey(0)
    kx, kt = jax.random.split(key)

    N, C = 16, 128
    smoothing = 0.1

    x = jax.random.normal(kx, (N, C), dtype=jnp.float32)
    target = jax.random.randint(kt, (N,), 0, C, dtype=jnp.int32)

    loss = label_smoothing_loss(x, target, smoothing=smoothing)
    loss = jax.block_until_ready(loss)

    ref = _reference(x, target, smoothing)
    assert jnp.allclose(loss, ref, rtol=1e-5, atol=1e-5), (loss, ref)

    print("KERNEL_OK")
</pallas_src>

<mosaic_0001>
module attributes {stable_mosaic.version = 11 : i64} {
  func.func @_label_smoothing_kernel(%arg0: i32, %arg1: memref<16x128xf32, #tpu.memory_space<vmem>>, %arg2: memref<16x1xi32, #tpu.memory_space<vmem>>, %arg3: memref<16x1xf32, #tpu.memory_space<vmem>>) attributes {dimension_semantics = [#tpu.dimension_semantics<parallel>], iteration_bounds = array<i64: 1>, scalar_prefetch = 0 : i64, scratch_operands = 0 : i64, tpu.core_type = #tpu.core_type<tc>, window_params = [{transform_indices = @transform_0, window_bounds = array<i64: 16, 128>}, {transform_indices = @transform_1, window_bounds = array<i64: 16, 1>}, {transform_indices = @transform_2, window_bounds = array<i64: 16, 1>}]} {
    %c0 = arith.constant 0 : index
    %c0_0 = arith.constant 0 : index
    %0 = vector.load %arg1[%c0, %c0_0] : memref<16x128xf32, #tpu.memory_space<vmem>>, vector<16x128xf32>
    %cst = arith.constant dense<0xFF800000> : vector<16xf32>
    %1 = vector.multi_reduction <maximumf>, %0, %cst [1] : vector<16x128xf32> to vector<16xf32>
    %2 = vector.shape_cast %1 : vector<16xf32> to vector<16x1xf32>
    %3 = vector.broadcast %2 : vector<16x1xf32> to vector<16x128xf32>
    %4 = arith.subf %0, %3 : vector<16x128xf32>
    %5 = math.exp %4 : vector<16x128xf32>
    %cst_1 = arith.constant dense<0.000000e+00> : vector<16xf32>
    %6 = vector.multi_reduction <add>, %5, %cst_1 [1] : vector<16x128xf32> to vector<16xf32>
    %7 = vector.shape_cast %6 : vector<16xf32> to vector<16x1xf32>
    %8 = math.log %7 : vector<16x1xf32>
    %9 = vector.broadcast %8 : vector<16x1xf32> to vector<16x128xf32>
    %10 = arith.subf %4, %9 : vector<16x128xf32>
    %11 = tpu.iota {dimensions = array<i32: 1>} : vector<16x128xi32>
    %c0_2 = arith.constant 0 : index
    %c0_3 = arith.constant 0 : index
    %12 = vector.load %arg2[%c0_2, %c0_3] : memref<16x1xi32, #tpu.memory_space<vmem>>, vector<16x1xi32>
    %13 = vector.broadcast %12 : vector<16x1xi32> to vector<16x128xi32>
    %14 = arith.cmpi eq, %11, %13 : vector<16x128xi32>
    %cst_4 = arith.constant 0.900781273 : f32
    %cst_5 = arith.constant 7.812500e-04 : f32
    %15 = vector.broadcast %cst_4 : f32 to vector<16x128xf32>
    %16 = vector.broadcast %cst_5 : f32 to vector<16x128xf32>
    %17 = arith.select %14, %15, %16 : vector<16x128xi1>, vector<16x128xf32>
    %18 = arith.mulf %17, %10 : vector<16x128xf32>
    %cst_6 = arith.constant dense<0.000000e+00> : vector<16xf32>
    %19 = vector.multi_reduction <add>, %18, %cst_6 [1] : vector<16x128xf32> to vector<16xf32>
    %20 = vector.shape_cast %19 : vector<16xf32> to vector<16x1xf32>
    %cst_7 = arith.constant 0.000000e+00 : f32
    %21 = vector.broadcast %cst_7 : f32 to vector<16x1xf32>
    %22 = arith.subf %21, %20 : vector<16x1xf32>
    %23 = tpu.iota {dimensions = array<i32: 0>} : vector<16x1xi32>
    %c16_i32 = arith.constant 16 : i32
    %24 = arith.muli %arg0, %c16_i32 : i32
    %25 = vector.broadcast %24 : i32 to vector<16x1xi32>
    %26 = arith.addi %23, %25 : vector<16x1xi32>
    %c16_i32_8 = arith.constant 16 : i32
    %27 = vector.broadcast %c16_i32_8 : i32 to vector<16x1xi32>
    %28 = arith.cmpi slt, %26, %27 : vector<16x1xi32>
    %cst_9 = arith.constant 0.000000e+00 : f32
    %29 = vector.broadcast %cst_9 : f32 to vector<16x1xf32>
    %30 = arith.select %28, %22, %29 : vector<16x1xi1>, vector<16x1xf32>
    %c0_10 = arith.constant 0 : index
    %c0_11 = arith.constant 0 : index
    %31 = vector.load %arg3[%c0_10, %c0_11] : memref<16x1xf32, #tpu.memory_space<vmem>>, vector<16x1xf32>
    tpu.vector_store %arg3[%c0_10, %c0_11], %30 {strides = array<i32>} : memref<16x1xf32, #tpu.memory_space<vmem>>, vector<16x1xf32>,
    return
  }
  func.func @transform_0(%arg0: i32) -> (i32, i32) {
    %c0_i32 = arith.constant 0 : i32
    %c0_i32_0 = arith.constant 0 : i32
    return %arg0, %c0_i32 : i32, i32
  }
  func.func @transform_1(%arg0: i32) -> (i32, i32) {
    %c0_i32 = arith.constant 0 : i32
    %c0_i32_0 = arith.constant 0 : i32
    return %arg0, %c0_i32 : i32, i32
  }
  func.func @transform_2(%arg0: i32) -> (i32, i32) {
    %c0_i32 = arith.constant 0 : i32
    %c0_i32_0 = arith.constant 0 : i32
    return %arg0, %c0_i32 : i32, i32
  }
}

</mosaic_0001>

<llo_original>
// kernel: tpu_custom_call.1
$region0: #{tpu_custom_call.1}
  #allocation0 [shape = 'u32[]', space=smem, size = 0x4, offset = 0x4, fixed_abs, tag = 'smem constant byte address 0x4 - core index']
  #allocation1 [shape = 'u32[72,128]{1,0:T(1,128)}', space=vmem, size = 0x9000, scoped, tag = 'internal scratch']
  %s0 = inlined_call_operand.vmem [shape: f32[16,128], index: 0, kind: input, shape index: {}]
  %s1 = inlined_call_operand.vmem [shape: s32[16,1], index: 1, kind: input, shape index: {}]
  %s2 = inlined_call_operand.vmem [shape: f32[16,1], index: 2, kind: output, shape index: {}]
  %s3 = sld [smem:[#allocation0]]
  $region18: #{tpu_custom_call.1} parent=0
    _
  %s5 = ssub.s32 1, %s3
  %s6 = scalar_select 0, %s5, %s3
  // Predicated region
  $region2: #{tpu_custom_call.1} parent=0 // pred_check
    _
  $region3: #{tpu_custom_call.1} parent=0 // pred_check_branch
    %8 = sbr.rel (0) target = $region5
  $region4: #{tpu_custom_call.1} parent=0 // pred_region
    _
  $region5: #{tpu_custom_call.1} parent=0 // pred_fallthru
    _
  // Predicated region
  $region6: #{tpu_custom_call.1} parent=0 // pred_check
    _
  $region7: #{tpu_custom_call.1} parent=0 // pred_check_branch
    %10 = sbr.rel (0) target = $region9
  $region8: #{tpu_custom_call.1} parent=0 // pred_region
    _
  $region9: #{tpu_custom_call.1} parent=0 // pred_fallthru
    _
  %v11 = vld [vmem:[%s0] sm:$0xff]
  %v12 = vld [vmem:[%s0 + $0x8] sm:$0xff]
  %13 = vmax.xlane.f32.xlu0 %v11
  %v14 = vpop.xlane.xlu0 %13
  %15 = vmax.xlane.f32.xlu0 %v12
  %v16 = vpop.xlane.xlu0 %15
  %v17 = vsub.f32 %v11, %v14
  %v18 = vsub.f32 %v12, %v16
  %v19 = vmul.f32 %v17, 1.442695
  %v20 = vpow.pop %v19
  %v21 = vmul.f32 %v18, 1.442695
  %v22 = vpow.pop %v21
  %23 = vadd.xlane.f32.xlu0 %v20
  %v24 = vpop.xlane.xlu0 %23
  %25 = vadd.xlane.f32.xlu0 %v22
  %v26 = vpop.xlane.xlu0 %25
  %v27 = vlog2.pop %v24
  %v28 = vmul.f32 %v27, 0.6931472
  %v29 = vlog2.pop %v26
  %v30 = vmul.f32 %v29, 0.6931472
  %v31 = vsub.f32 %v17, %v28
  %v32 = vsub.f32 %v18, %v30
  %v33 = vlaneseq
  %v34 = vand.u32 %v33, 127
  %v35 = vld [vmem:[%s1] sm:$0xff]
  %v36 = vld [vmem:[%s1 + $0x8] sm:$0xff]
  %37 = vset.pattern.permute.xlu0 0
  %38 = vperm.xlu0 %37, %v35
  %v39 = vpop.permute.xlu0 %38
  %40 = vset.pattern.permute.xlu0 0
  %41 = vperm.xlu0 %40, %v36
  %v42 = vpop.permute.xlu0 %41
  %vm43 = vcmp.eq.s32.totalorder %v34, %v39
  %vm44 = vcmp.eq.s32.totalorder %v34, %v42
  %v45 = vsel %vm43, 0.9007813, 0.00078125
  %v46 = vsel %vm44, 0.9007813, 0.00078125
  %v47 = vmul.f32 %v45, %v31
  %v48 = vmul.f32 %v46, %v32
  %49 = vadd.xlane.f32.xlu0 %v47
  %v50 = vpop.xlane.xlu0 %49
  %51 = vadd.xlane.f32.xlu0 %v48
  %v52 = vpop.xlane.xlu0 %51
  %v53 = vsub.f32 0.0, %v50
  %v54 = vsub.f32 0.0, %v52
  %v55 = vlaneseq
  %v56 = vshrl.u32 %v55, 7
  %v57 = vadd.s32 %v56, 8
  %s58 = smul.u32 0, 16
  %v59 = vstv %s58
  %v60 = vadd.s32 %v56, %v59
  %v61 = vadd.s32 %v57, %v59
  %vm62 = vcmp.lt.s32.totalorder %v60, 16
  %vm63 = vcmp.lt.s32.totalorder %v61, 16
  %v64 = vsel %vm62, %v53, 0.0
  %v65 = vsel %vm63, %v54, 0.0
  %vm66 = vcmask 7168
  %67 = vst.msk [vmem:[%s2] sm:$0xff] %vm66, %v64
  %68 = vst.msk [vmem:[%s2 + $0x8] sm:$0xff] %vm66, %v65
  // Predicated region
  $region10: #{tpu_custom_call.1} parent=0 // pred_check
    _
  $region11: #{tpu_custom_call.1} parent=0 // pred_check_branch
    %70 = sbr.rel (0) target = $region13
  $region12: #{tpu_custom_call.1} parent=0 // pred_region
    _
  $region13: #{tpu_custom_call.1} parent=0 // pred_fallthru
    _
  // Predicated region
  $region14: #{tpu_custom_call.1} parent=0 // pred_check
    _
  $region15: #{tpu_custom_call.1} parent=0 // pred_check_branch
    %72 = sbr.rel (0) target = $region17
  $region16: #{tpu_custom_call.1} parent=0 // pred_region
    _
  $region17: #{tpu_custom_call.1} parent=0 // pred_fallthru
    _

</llo_original>
